<compile_context>
chip_gen: v7x
topology: tpu7x:2x2x1
jax: 0.10.0
libtpu: 0.0.40
codegen_flags: <defaults>
</compile_context>

<pallas_src>
import functools

import jax
import jax.numpy as jnp
from jax import lax
from jax.experimental import pallas as pl
from jax.experimental.pallas import tpu as pltpu


def _round_up(x, m):
    return (x + m - 1) // m * m


def _dsconv_kernel(x_ref, xl_ref, xr_ref, wdw_ref, wpw_ref, bias_ref, out_ref,
                   *, k, lh, tl, bblk, mxu_bf16):
    """One (batch-block, L-tile) grid step.

    x_ref   : (bblk, C, tl)    current input tile (f32)
    xl_ref  : (bblk, C, 128)   128 input columns just left of the tile
    xr_ref  : (bblk, C, 128)   128 input columns just right of the tile
    wdw_ref : (C, k)           depthwise taps (f32)
    wpw_ref : (O, C)           pointwise weights (bf16 or f32)
    bias_ref: (O, 1)           pointwise bias (f32)
    out_ref : (bblk, O, tl)    fused output tile
    """
    l = pl.program_id(1)
    nl = pl.num_programs(1)

    xm = x_ref[...]
    xl = xl_ref[...]
    xr = xr_ref[...]
    # Halo blocks: real neighbours in the interior, zeros at the array edges
    # (reproduces Conv1d zero padding without any HBM-level jnp.pad).
    xl = jnp.where(l > 0, xl, jnp.zeros_like(xl))
    xr = jnp.where(l < nl - 1, xr, jnp.zeros_like(xr))
    # Lane-aligned concat (128 | tl | 128) -> window of width tl + 256.
    xwin = jnp.concatenate([xl, xm, xr], axis=-1)

    # Depthwise conv: k shifted multiply-accumulates on the VPU, f32 accum.
    wdw = wdw_ref[...]
    acc = None
    for t in range(k):
        s = 128 - lh + t
        term = wdw[:, t:t + 1] * xwin[:, :, s:s + tl]
        acc = term if acc is None else acc + term

    acc_mm = acc.astype(jnp.bfloat16) if mxu_bf16 else acc
    wpw = wpw_ref[...]
    bias = bias_ref[...]

    # Pointwise 1x1 conv == (O, C) @ (C, tl) on the MXU, fused bias + ReLU.
    # TODO(synk): flatten the bblk loop into one (O, C) @ (C, bblk*tl) matmul
    # and interleave the depthwise VPU work of chunk i+1 with the matmul of i.
    for bi in range(bblk):
        y = jnp.dot(wpw, acc_mm[bi], preferred_element_type=jnp.float32)
        out_ref[bi] = jnp.maximum(y + bias, 0.0).astype(out_ref.dtype)


def depthwise_separable_conv(x, w_dw, w_pw, b_pw, *, k, mxu_bf16=True,
                             tl_max=2048, n_target=1024):
    """F.relu(pointwise_conv(depthwise_conv(x))) with
         depthwise_conv = Conv1d(C, C, k, groups=C, padding=k//2, bias=False)
         pointwise_conv = Conv1d(C, O, 1, bias=True)

    x    : (B, C, L) f32
    w_dw : (C, k)    f32   (PyTorch weight (C, 1, k) squeezed)
    w_pw : (O, C)    f32   (PyTorch weight (O, C, 1) squeezed)
    b_pw : (O,)      f32
    """
    B, C, L = x.shape
    O = w_pw.shape[0]
    assert w_dw.shape == (C, k) and w_pw.shape == (O, C) and b_pw.shape == (O,)
    assert 1 <= k <= 128

    lh = k // 2                  # left halo == PyTorch padding
    l_out = L + 2 * lh - k + 1   # PyTorch Conv1d output length

    # ---- tiling -------------------------------------------------------------
    Lp = _round_up(l_out, 128)   # lane-dense output tiles
    Op = _round_up(O, 8)         # sublane-dense output channels
    m = Lp // 128

    # L-tile: largest multiple of 128 that divides Lp and fits an ~8 MiB budget
    # for the double-buffered (input + output) tile columns.
    col_bytes = 2 * 4 * (C + Op)
    tl_cap = max(128, min(tl_max, (8 * 1024 * 1024) // col_bytes))
    tl_cap = (tl_cap // 128) * 128
    d_best = 1
    for d in range(1, m + 1):
        if m % d == 0 and d * 128 <= tl_cap:
            d_best = d
    tl = d_best * 128
    nl = Lp // tl
    r = tl // 128

    # Batch block: pack batch elements per grid step when tiles are short.
    bb_cap = max(1, n_target // tl)
    bblk = 1
    for d in range(1, B + 1):
        if B % d == 0 and d <= bb_cap:
            bblk = d
    nb = B // bblk

    # ---- operand prep (no full-input pad in the aligned odd-k case) ---------
    x_p = x if Lp == L else jnp.pad(x, ((0, 0), (0, 0), (0, Lp - L)))
    wpw = w_pw if Op == O else jnp.pad(w_pw, ((0, Op - O), (0, 0)))
    bias = b_pw if Op == O else jnp.pad(b_pw, ((0, Op - O),))
    if mxu_bf16:
        wpw = wpw.astype(jnp.bfloat16)
    bias2d = bias.reshape(Op, 1).astype(jnp.float32)

    kernel = functools.partial(_dsconv_kernel, k=k, lh=lh, tl=tl, bblk=bblk,
                               mxu_bf16=mxu_bf16)

    out = pl.pallas_call(
        kernel,
        out_shape=jax.ShapeDtypeStruct((B, Op, Lp), x.dtype),
        grid_spec=pltpu.PrefetchScalarGridSpec(
            num_scalar_prefetch=0,
            grid=(nb, nl),
            in_specs=[
                # current input tile
                pl.BlockSpec((bblk, C, tl), lambda b, l: (b, 0, l)),
                # 128 columns just left / right of the tile (clamped at the
                # edges; masked to zero inside the kernel)
                pl.BlockSpec((bblk, C, 128),
                             lambda b, l: (b, 0, jnp.maximum(l * r - 1, 0))),
                pl.BlockSpec((bblk, C, 128),
                             lambda b, l: (b, 0, jnp.minimum((l + 1) * r, m - 1))),
                # tiny weights: constant index maps -> stay resident in VMEM
                pl.BlockSpec((C, k), lambda b, l: (0, 0)),
                pl.BlockSpec((Op, C), lambda b, l: (0, 0)),
                pl.BlockSpec((Op, 1), lambda b, l: (0, 0)),
            ],
            out_specs=pl.BlockSpec((bblk, Op, tl), lambda b, l: (b, 0, l)),
        ),
        compiler_params=pltpu.CompilerParams(
            dimension_semantics=("parallel", "parallel"),
            vmem_limit_bytes=48 * 1024 * 1024,
        ),
    )(x_p, x_p, x_p, w_dw, wpw, bias2d)

    if Op != O or Lp != l_out:
        out = out[:, :O, :l_out]
    return out


def _reference(x, w_dw, w_pw, b_pw, k):
    """Pure-JAX reference matching PyTorch Conv1d semantics."""
    C = x.shape[1]
    O = w_pw.shape[0]
    pad = k // 2
    dn = ("NCH", "OIH", "NCH")
    dw = lax.conv_general_dilated(
        x, w_dw.reshape(C, 1, k), window_strides=(1,),
        padding=[(pad, pad)], dimension_numbers=dn, feature_group_count=C)
    pw = lax.conv_general_dilated(
        dw, w_pw.reshape(O, C, 1), window_strides=(1,),
        padding=[(0, 0)], dimension_numbers=dn)
    return jnp.maximum(pw + b_pw.reshape(1, O, 1), 0.0)


if __name__ == "__main__":
    key = jax.random.PRNGKey(0)
    k_x, k_dw, k_pw, k_b = jax.random.split(key, 4)

    # --- Test 1: module-sized shapes (single L tile, batch-blocked step) -----
    B, C_in, C_out, L, K = 2, 4, 8, 16, 3
    x = jax.random.normal(k_x, (B, C_in, L), dtype=jnp.float32)
    w_dw = jax.random.normal(k_dw, (C_in, K), dtype=jnp.float32) * 0.5
    w_pw = jax.random.normal(k_pw, (C_out, C_in), dtype=jnp.float32) * 0.5
    b_pw = jax.random.normal(k_b, (C_out,), dtype=jnp.float32) * 0.1

    ref = _reference(x, w_dw, w_pw, b_pw, K)

    out_f32 = jax.block_until_ready(
        depthwise_separable_conv(x, w_dw, w_pw, b_pw, k=K, mxu_bf16=False))
    assert out_f32.shape == ref.shape == (B, C_out, L)
    assert jnp.allclose(out_f32, ref, atol=1e-4, rtol=1e-4)

    out_bf16 = jax.block_until_ready(
        depthwise_separable_conv(x, w_dw, w_pw, b_pw, k=K))   # bf16 MXU path
    assert out_bf16.shape == ref.shape
    assert jnp.allclose(out_bf16, ref, atol=5e-2, rtol=5e-2)

    # --- Test 2: multi-L-tile path (exercises halo handling + edge masking) --
    B2, C2, O2, L2 = 2, 8, 16, 300
    k_x2, k_dw2, k_pw2, k_b2 = jax.random.split(jax.random.PRNGKey(1), 4)
    x2 = jax.random.normal(k_x2, (B2, C2, L2), dtype=jnp.float32)
    w_dw2 = jax.random.normal(k_dw2, (C2, K), dtype=jnp.float32) * 0.5
    w_pw2 = jax.random.normal(k_pw2, (O2, C2), dtype=jnp.float32) * 0.5
    b_pw2 = jax.random.normal(k_b2, (O2,), dtype=jnp.float32) * 0.1

    ref2 = _reference(x2, w_dw2, w_pw2, b_pw2, K)
    out2 = jax.block_until_ready(
        depthwise_separable_conv(x2, w_dw2, w_pw2, b_pw2, k=K,
                                 mxu_bf16=False, tl_max=128))
    assert out2.shape == ref2.shape == (B2, O2, L2)
    assert jnp.allclose(out2, ref2, atol=1e-4, rtol=1e-4)

    print("KERNEL_OK")
</pallas_src>

<mosaic_0001>
module attributes {stable_mosaic.version = 11 : i64} {
  func.func @_dsconv_kernel(%arg0: i32, %arg1: i32, %arg2: memref<2x4x128xf32, #tpu.memory_space<vmem>>, %arg3: memref<2x4x128xf32, #tpu.memory_space<vmem>>, %arg4: memref<2x4x128xf32, #tpu.memory_space<vmem>>, %arg5: memref<4x3xf32, #tpu.memory_space<vmem>>, %arg6: memref<8x4xf32, #tpu.memory_space<vmem>>, %arg7: memref<8x1xf32, #tpu.memory_space<vmem>>, %arg8: memref<2x8x128xf32, #tpu.memory_space<vmem>>) attributes {dimension_semantics = [#tpu.dimension_semantics<parallel>, #tpu.dimension_semantics<parallel>], iteration_bounds = array<i64: 1, 1>, scalar_prefetch = 0 : i64, scratch_operands = 0 : i64, tpu.core_type = #tpu.core_type<tc>, window_params = [{transform_indices = @transform_0, window_bounds = array<i64: 2, 4, 128>}, {transform_indices = @transform_1, window_bounds = array<i64: 2, 4, 128>}, {transform_indices = @transform_2, window_bounds = array<i64: 2, 4, 128>}, {pipeline_mode = #tpu.pipeline_mode<synchronous>, transform_indices = @transform_3, window_bounds = array<i64: 4, 3>}, {pipeline_mode = #tpu.pipeline_mode<synchronous>, transform_indices = @transform_4, window_bounds = array<i64: 8, 4>}, {pipeline_mode = #tpu.pipeline_mode<synchronous>, transform_indices = @transform_5, window_bounds = array<i64: 8, 1>}, {transform_indices = @transform_6, window_bounds = array<i64: 2, 8, 128>}]} {
    %c0 = arith.constant 0 : index
    %c0_0 = arith.constant 0 : index
    %c0_1 = arith.constant 0 : index
    %0 = vector.load %arg2[%c0, %c0_0, %c0_1] : memref<2x4x128xf32, #tpu.memory_space<vmem>>, vector<2x4x128xf32>
    %c0_2 = arith.constant 0 : index
    %c0_3 = arith.constant 0 : index
    %c0_4 = arith.constant 0 : index
    %1 = vector.load %arg3[%c0_2, %c0_3, %c0_4] : memref<2x4x128xf32, #tpu.memory_space<vmem>>, vector<2x4x128xf32>
    %c0_5 = arith.constant 0 : index
    %c0_6 = arith.constant 0 : index
    %c0_7 = arith.constant 0 : index
    %2 = vector.load %arg4[%c0_5, %c0_6, %c0_7] : memref<2x4x128xf32, #tpu.memory_space<vmem>>, vector<2x4x128xf32>
    %c0_i32 = arith.constant 0 : i32
    %3 = arith.cmpi sgt, %arg1, %c0_i32 : i32
    %cst = arith.constant 0.000000e+00 : f32
    %4 = vector.broadcast %cst : f32 to vector<2x4x128xf32>
    %5 = arith.select %3, %1, %4 : vector<2x4x128xf32>
    %c0_i32_8 = arith.constant 0 : i32
    %6 = arith.cmpi slt, %arg1, %c0_i32_8 : i32
    %cst_9 = arith.constant 0.000000e+00 : f32
    %7 = vector.broadcast %cst_9 : f32 to vector<2x4x128xf32>
    %8 = arith.select %6, %2, %7 : vector<2x4x128xf32>
    %9 = tpu.concatenate %5, %0, %8 in 2 : vector<2x4x128xf32>, vector<2x4x128xf32>, vector<2x4x128xf32> -> vector<2x4x384xf32>
    %c0_10 = arith.constant 0 : index
    %c0_11 = arith.constant 0 : index
    %10 = vector.load %arg5[%c0_10, %c0_11] : memref<4x3xf32, #tpu.memory_space<vmem>>, vector<4x3xf32>
    %11 = vector.extract_strided_slice %10 {offsets = [0, 0], sizes = [4, 1], strides = [1, 1]} : vector<4x3xf32> to vector<4x1xf32>
    %12 = vector.extract_strided_slice %9 {offsets = [0, 0, 127], sizes = [2, 4, 128], strides = [1, 1, 1]} : vector<2x4x384xf32> to vector<2x4x128xf32>
    %13 = vector.shape_cast %11 : vector<4x1xf32> to vector<1x4x1xf32>
    %14 = vector.broadcast %13 : vector<1x4x1xf32> to vector<2x4x128xf32>
    %15 = arith.mulf %14, %12 : vector<2x4x128xf32>
    %16 = vector.extract_strided_slice %10 {offsets = [0, 1], sizes = [4, 1], strides = [1, 1]} : vector<4x3xf32> to vector<4x1xf32>
    %17 = vector.extract_strided_slice %9 {offsets = [0, 0, 128], sizes = [2, 4, 128], strides = [1, 1, 1]} : vector<2x4x384xf32> to vector<2x4x128xf32>
    %18 = vector.shape_cast %16 : vector<4x1xf32> to vector<1x4x1xf32>
    %19 = vector.broadcast %18 : vector<1x4x1xf32> to vector<2x4x128xf32>
    %20 = arith.mulf %19, %17 : vector<2x4x128xf32>
    %21 = arith.addf %15, %20 : vector<2x4x128xf32>
    %22 = vector.extract_strided_slice %10 {offsets = [0, 2], sizes = [4, 1], strides = [1, 1]} : vector<4x3xf32> to vector<4x1xf32>
    %23 = vector.extract_strided_slice %9 {offsets = [0, 0, 129], sizes = [2, 4, 128], strides = [1, 1, 1]} : vector<2x4x384xf32> to vector<2x4x128xf32>
    %24 = vector.shape_cast %22 : vector<4x1xf32> to vector<1x4x1xf32>
    %25 = vector.broadcast %24 : vector<1x4x1xf32> to vector<2x4x128xf32>
    %26 = arith.mulf %25, %23 : vector<2x4x128xf32>
    %27 = arith.addf %21, %26 : vector<2x4x128xf32>
    %c0_12 = arith.constant 0 : index
    %c0_13 = arith.constant 0 : index
    %28 = vector.load %arg6[%c0_12, %c0_13] : memref<8x4xf32, #tpu.memory_space<vmem>>, vector<8x4xf32>
    %c0_14 = arith.constant 0 : index
    %c0_15 = arith.constant 0 : index
    %29 = vector.load %arg7[%c0_14, %c0_15] : memref<8x1xf32, #tpu.memory_space<vmem>>, vector<8x1xf32>
    %30 = vector.extract_strided_slice %27 {offsets = [0, 0, 0], sizes = [1, 4, 128], strides = [1, 1, 1]} : vector<2x4x128xf32> to vector<1x4x128xf32>
    %31 = vector.shape_cast %30 : vector<1x4x128xf32> to vector<4x128xf32>
    %cst_16 = arith.constant dense<0.000000e+00> : vector<8x128xf32>
    %32 = tpu.matmul %28, %31, %cst_16 {dimension_numbers = #tpu.dot_dimension_numbers<[1], [0], [0], [1], [0, 0, 1, 1], [], []>} : vector<8x4xf32>, vector<4x128xf32>, vector<8x128xf32> -> vector<8x128xf32>
    %33 = vector.broadcast %29 : vector<8x1xf32> to vector<8x128xf32>
    %34 = arith.addf %32, %33 : vector<8x128xf32>
    %cst_17 = arith.constant 0.000000e+00 : f32
    %35 = vector.broadcast %cst_17 : f32 to vector<8x128xf32>
    %36 = arith.maximumf %34, %35 : vector<8x128xf32>
    %c0_18 = arith.constant 0 : index
    %c0_19 = arith.constant 0 : index
    %c0_20 = arith.constant 0 : index
    %37 = vector.load %arg8[%c0_18, %c0_19, %c0_20] : memref<2x8x128xf32, #tpu.memory_space<vmem>>, vector<1x8x128xf32>
    %38 = vector.shape_cast %37 : vector<1x8x128xf32> to vector<8x128xf32>
    %39 = vector.shape_cast %36 : vector<8x128xf32> to vector<1x8x128xf32>
    tpu.vector_store %arg8[%c0_18, %c0_19, %c0_20], %39 {strides = array<i32>} : memref<2x8x128xf32, #tpu.memory_space<vmem>>, vector<1x8x128xf32>,
    %40 = vector.extract_strided_slice %27 {offsets = [1, 0, 0], sizes = [1, 4, 128], strides = [1, 1, 1]} : vector<2x4x128xf32> to vector<1x4x128xf32>
    %41 = vector.shape_cast %40 : vector<1x4x128xf32> to vector<4x128xf32>
    %cst_21 = arith.constant dense<0.000000e+00> : vector<8x128xf32>
    %42 = tpu.matmul %28, %41, %cst_21 {dimension_numbers = #tpu.dot_dimension_numbers<[1], [0], [0], [1], [0, 0, 1, 1], [], []>} : vector<8x4xf32>, vector<4x128xf32>, vector<8x128xf32> -> vector<8x128xf32>
    %43 = vector.broadcast %29 : vector<8x1xf32> to vector<8x128xf32>
    %44 = arith.addf %42, %43 : vector<8x128xf32>
    %cst_22 = arith.constant 0.000000e+00 : f32
    %45 = vector.broadcast %cst_22 : f32 to vector<8x128xf32>
    %46 = arith.maximumf %44, %45 : vector<8x128xf32>
    %c1 = arith.constant 1 : index
    %c0_23 = arith.constant 0 : index
    %c0_24 = arith.constant 0 : index
    %47 = vector.load %arg8[%c1, %c0_23, %c0_24] : memref<2x8x128xf32, #tpu.memory_space<vmem>>, vector<1x8x128xf32>
    %48 = vector.shape_cast %47 : vector<1x8x128xf32> to vector<8x128xf32>
    %49 = vector.shape_cast %46 : vector<8x128xf32> to vector<1x8x128xf32>
    tpu.vector_store %arg8[%c1, %c0_23, %c0_24], %49 {strides = array<i32>} : memref<2x8x128xf32, #tpu.memory_space<vmem>>, vector<1x8x128xf32>,
    return
  }
  func.func @transform_0(%arg0: i32, %arg1: i32) -> (i32, i32, i32) {
    %c0_i32 = arith.constant 0 : i32
    %c0_i32_0 = arith.constant 0 : i32
    return %arg0, %c0_i32, %arg1 : i32, i32, i32
  }
  func.func @transform_1(%arg0: i32, %arg1: i32) -> (i32, i32, i32) {
    %c1_i32 = arith.constant 1 : i32
    %0 = arith.muli %arg1, %c1_i32 : i32
    %c1_i32_0 = arith.constant 1 : i32
    %1 = arith.subi %0, %c1_i32_0 : i32
    %c0_i32 = arith.constant 0 : i32
    %2 = arith.maxsi %1, %c0_i32 : i32
    %c0_i32_1 = arith.constant 0 : i32
    %c0_i32_2 = arith.constant 0 : i32
    return %arg0, %c0_i32_1, %2 : i32, i32, i32
  }
  func.func @transform_2(%arg0: i32, %arg1: i32) -> (i32, i32, i32) {
    %c1_i32 = arith.constant 1 : i32
    %0 = arith.addi %arg1, %c1_i32 : i32
    %c1_i32_0 = arith.constant 1 : i32
    %1 = arith.muli %0, %c1_i32_0 : i32
    %c0_i32 = arith.constant 0 : i32
    %2 = arith.minsi %1, %c0_i32 : i32
    %c0_i32_1 = arith.constant 0 : i32
    %c0_i32_2 = arith.constant 0 : i32
    return %arg0, %c0_i32_1, %2 : i32, i32, i32
  }
  func.func @transform_3(%arg0: i32, %arg1: i32) -> (i32, i32) {
    %c0_i32 = arith.constant 0 : i32
    %c0_i32_0 = arith.constant 0 : i32
    %c0_i32_1 = arith.constant 0 : i32
    return %c0_i32, %c0_i32_0 : i32, i32
  }
  func.func @transform_4(%arg0: i32, %arg1: i32) -> (i32, i32) {
    %c0_i32 = arith.constant 0 : i32
    %c0_i32_0 = arith.constant 0 : i32
    %c0_i32_1 = arith.constant 0 : i32
    return %c0_i32, %c0_i32_0 : i32, i32
  }
  func.func @transform_5(%arg0: i32, %arg1: i32) -> (i32, i32) {
    %c0_i32 = arith.constant 0 : i32
    %c0_i32_0 = arith.constant 0 : i32
    %c0_i32_1 = arith.constant 0 : i32
    return %c0_i32, %c0_i32_0 : i32, i32
  }
  func.func @transform_6(%arg0: i32, %arg1: i32) -> (i32, i32, i32) {
    %c0_i32 = arith.constant 0 : i32
    %c0_i32_0 = arith.constant 0 : i32
    return %arg0, %c0_i32, %arg1 : i32, i32, i32
  }
}

</mosaic_0001>

<llo_original>
// kernel: tpu_custom_call.1
$region0: #{tpu_custom_call.1}
  #allocation0 [shape = 'u32[]', space=smem, size = 0x4, offset = 0x4, fixed_abs, tag = 'smem constant byte address 0x4 - core index']
  #allocation1 [shape = 'u32[144,128]{1,0:T(1,128)}', space=vmem, size = 0x12000, scoped, tag = 'internal scratch']
  %s0 = inlined_call_operand.vmem [shape: f32[2,4,128], index: 0, kind: input, shape index: {}]
  %s1 = inlined_call_operand.vmem [shape: f32[2,4,128], index: 1, kind: input, shape index: {}]
  %s2 = inlined_call_operand.vmem [shape: f32[2,4,128], index: 2, kind: input, shape index: {}]
  %s3 = inlined_call_operand.vmem [shape: f32[4,3], index: 3, kind: input, shape index: {}]
  %s4 = inlined_call_operand.vmem [shape: f32[8,4], index: 4, kind: input, shape index: {}]
  %s5 = inlined_call_operand.vmem [shape: f32[8,1], index: 5, kind: input, shape index: {}]
  %s6 = inlined_call_operand.hbm [shape: f32[2,8,128], index: 6, kind: output, shape index: {}]
  %s7 = sld [smem:[#allocation0]]
  $region34: #{tpu_custom_call.1} parent=0
    _
  %s9 = ssub.s32 1, %s7
  %s10 = scalar_select 0, %s9, %s7
  $region1: #{tpu_custom_call.1} parent=0
    #allocation2 [shape = 'u8[8192]{0}', space=vmem, size = 0x2000, scoped, tag = 'output window, operand 0, single buffered']
    #allocation3 [shape = 's32[1]{0}', space=sflag, size = 0x4, scoped, tag = 'scoped memory for tpu_custom_call.1']
    %11 = vsyncpa [#allocation3], 0
    // Predicated region
    $region2: #{tpu_custom_call.1} parent=1 // pred_check
      _
    $region3: #{tpu_custom_call.1} parent=1 // pred_check_branch
      %13 = sbr.rel (0) target = $region5
    $region4: #{tpu_custom_call.1} parent=1 // pred_region
      _
    $region5: #{tpu_custom_call.1} parent=1 // pred_fallthru
      _
    // Predicated region
    $region6: #{tpu_custom_call.1} parent=1 // pred_check
      _
    $region7: #{tpu_custom_call.1} parent=1 // pred_check_branch
      %15 = sbr.rel (0) target = $region9
    $region8: #{tpu_custom_call.1} parent=1 // pred_region
      %s16 = ssub.s32 0, 1
      %p17 = scmp.gt.s32.totalorder %s16, 0
      %s18 = scalar_select %p17, %s16, 0
      %p19 = scmp.lt.s32.totalorder %s18, 0
      %s20 = scalar_select %p19, %s18, 0
      %s21 = smul.addr %s20, 4
      %s22 = scalar_lea.vmem %s1, %s21
      %s23 = ssub.s32 0, 1
      %p24 = scmp.gt.s32.totalorder %s23, 0
      %s25 = scalar_select %p24, %s23, 0
    $region9: #{tpu_custom_call.1} parent=1 // pred_fallthru
      _
    // Predicated region
    $region10: #{tpu_custom_call.1} parent=1 // pred_check
      _
    $region11: #{tpu_custom_call.1} parent=1 // pred_check_branch
      %27 = sbr.rel (0) target = $region13
    $region12: #{tpu_custom_call.1} parent=1 // pred_region
      %s28 = sadd.s32 0, 1
      %p29 = scmp.lt.s32.totalorder %s28, 0
      %s30 = scalar_select %p29, %s28, 0
      %p31 = scmp.lt.s32.totalorder %s30, 0
      %s32 = scalar_select %p31, %s30, 0
      %s33 = smul.addr %s32, 4
      %s34 = scalar_lea.vmem %s2, %s33
      %s35 = sadd.s32 0, 1
      %p36 = scmp.lt.s32.totalorder %s35, 0
      %s37 = scalar_select %p36, %s35, 0
    $region13: #{tpu_custom_call.1} parent=1 // pred_fallthru
      _
    // Predicated region
    $region14: #{tpu_custom_call.1} parent=1 // pred_check
      _
    $region15: #{tpu_custom_call.1} parent=1 // pred_check_branch
      %39 = sbr.rel (0) target = $region17
    $region16: #{tpu_custom_call.1} parent=1 // pred_region
      _
    $region17: #{tpu_custom_call.1} parent=1 // pred_fallthru
      _
    // Predicated region
    $region18: #{tpu_custom_call.1} parent=1 // pred_check
      _
    $region19: #{tpu_custom_call.1} parent=1 // pred_check_branch
      %41 = sbr.rel (0) target = $region21
    $region20: #{tpu_custom_call.1} parent=1 // pred_region
      _
    $region21: #{tpu_custom_call.1} parent=1 // pred_fallthru
      _
    // Predicated region
    $region22: #{tpu_custom_call.1} parent=1 // pred_check
      _
    $region23: #{tpu_custom_call.1} parent=1 // pred_check_branch
      %43 = sbr.rel (0) target = $region25
    $region24: #{tpu_custom_call.1} parent=1 // pred_region
      _
    $region25: #{tpu_custom_call.1} parent=1 // pred_fallthru
      _
    %s44 = ssub.s32 0, 1
    %p45 = scmp.gt.s32.totalorder %s44, 0
    %s46 = scalar_select %p45, %s44, 0
    %p47 = scmp.lt.s32.totalorder %s46, 0
    %s48 = scalar_select %p47, %s46, 0
    %s49 = smul.addr %s48, 4
    %s50 = scalar_lea.vmem %s1, %s49
    %s51 = sadd.s32 0, 1
    %p52 = scmp.lt.s32.totalorder %s51, 0
    %s53 = scalar_select %p52, %s51, 0
    %p54 = scmp.lt.s32.totalorder %s53, 0
    %s55 = scalar_select %p54, %s53, 0
    %s56 = smul.addr %s55, 4
    %s57 = scalar_lea.vmem %s2, %s56
    %s58 = ssub.s32 0, 1
    %p59 = scmp.gt.s32.totalorder %s58, 0
    %s60 = scalar_select %p59, %s58, 0
    %p61 = scmp.lt.s32.totalorder %s60, 0
    %s62 = scalar_select %p61, %s60, 0
    %s63 = smul.addr %s62, 4
    %s64 = scalar_lea.vmem %s1, %s63
    %s65 = ssub.s32 0, 1
    %p66 = scmp.gt.s32.totalorder %s65, 0
    %s67 = scalar_select %p66, %s65, 0
    %s68 = sadd.s32 0, 1
    %p69 = scmp.lt.s32.totalorder %s68, 0
    %s70 = scalar_select %p69, %s68, 0
    %p71 = scmp.lt.s32.totalorder %s70, 0
    %s72 = scalar_select %p71, %s70, 0
    %s73 = smul.addr %s72, 4
    %s74 = scalar_lea.vmem %s2, %s73
    %s75 = sadd.s32 0, 1
    %p76 = scmp.lt.s32.totalorder %s75, 0
    %s77 = scalar_select %p76, %s75, 0
    %v78 = vld [vmem:[%s0] sm:$0xf]
    %v79 = vld [vmem:[%s0 + $0x4] sm:$0xf]
    %v80 = vld [vmem:[%s64] sm:$0xf]
    %v81 = vld [vmem:[%s64 + $0x4] sm:$0xf]
    %v82 = vld [vmem:[%s74] sm:$0xf]
    %v83 = vld [vmem:[%s74 + $0x4] sm:$0xf]
    %p84 = scmp.gt.s32.totalorder 0, 0
    %s85 = scalar_select %p84, 1, 0
    %v86 = vstv %s85
    %vm87 = vcmp.eq.s32.totalorder %v86, 1
    %v88 = vsel %vm87, %v80, 0.0
    %v89 = vsel %vm87, %v81, 0.0
    %p90 = scmp.lt.s32.totalorder 0, 0
    %s91 = scalar_select %p90, 1, 0
    %v92 = vstv %s91
    %vm93 = vcmp.eq.s32.totalorder %v92, 1
    %v94 = vsel %vm93, %v82, 0.0
    %v95 = vsel %vm93, %v83, 0.0
    %v96 = vld [vmem:[%s3] sm:$0xf]
    %98 = vset.pattern.permute.xlu0 0
    %99 = vperm.xlu0 %98, %v96
    %v100 = vpop.permute.xlu0 %99
    %v102 = vmul.f32 %v100, %v88
    %v103 = vmul.f32 %v100, %v78
    %v104 = vmul.f32 %v100, %v89
    %v105 = vmul.f32 %v100, %v79
    %106 = vset.pattern.permute.xlu0 1
    %107 = vperm.xlu0 %106, %v96
    %v108 = vpop.permute.xlu0 %107
    %v110 = vmul.f32 %v108, %v78
    %v111 = vmul.f32 %v108, %v79
    %114 = vrot.lane.b32.xlu0 %v110, 127
    %v115 = vpop.permute.xlu0 %114
    %116 = vrot.lane.b32.xlu0 %v111, 127
    %v117 = vpop.permute.xlu0 %116
    %v120 = vadd.f32 %v102, %v115
    %v121 = vadd.f32 %v103, %v115
    %v122 = vadd.f32 %v104, %v117
    %v123 = vadd.f32 %v105, %v117
    %124 = vset.pattern.permute.xlu0 2
    %125 = vperm.xlu0 %124, %v96
    %v126 = vpop.permute.xlu0 %125
    %v128 = vmul.f32 %v126, %v78
    %v129 = vmul.f32 %v126, %v94
    %v130 = vmul.f32 %v126, %v79
    %v131 = vmul.f32 %v126, %v95
    %136 = vrot.lane.b32.xlu0 %v128, 126
    %v137 = vpop.permute.xlu0 %136
    %138 = vrot.lane.b32.xlu0 %v129, 126
    %v139 = vpop.permute.xlu0 %138
    %140 = vrot.lane.b32.xlu0 %v130, 126
    %v141 = vpop.permute.xlu0 %140
    %142 = vrot.lane.b32.xlu0 %v131, 126
    %v143 = vpop.permute.xlu0 %142
    %vm144 = vcmask 1031168
    %v145 = vsel %vm144, %v137, %v139
    %v146 = vsel %vm144, %v141, %v143
    %v151 = vadd.f32 %v120, %v137
    %v152 = vadd.f32 %v121, %v145
    %v153 = vadd.f32 %v122, %v141
    %v154 = vadd.f32 %v123, %v146
    %v155 = vld [vmem:[%s4] sm:$0xff]
    %v156 = vld [vmem:[%s5] sm:$0xff]
    %158 = vset.pattern.permute.xlu0 0
    %159 = vperm.xlu0 %158, %v156
    %v160 = vpop.permute.xlu0 %159
    %164 = vrot.lane.b32.xlu0 %v151, 1
    %v165 = vpop.permute.xlu0 %164
    %166 = vrot.lane.b32.xlu0 %v152, 1
    %v167 = vpop.permute.xlu0 %166
    %vm168 = vcmask 7168
    %v169 = vsel %vm168, %v165, %v167
    %vm170 = vcmask 31744
    %v172 = vsel %vm170, %v155, 0
    %vm174 = vcmask 1043456
    %v175 = vsel %vm174, %v169, 0
    %177 = vmatprep.subr.mxu0 0.0
    %178 = vmatpush1.msra.mxu0 %v175
    %179 = vmatprep.subr.mxu0 0.0
    %180 = vmatpush1.msra.mxu0 0.0
    %181 = vmatprep.subr.mxu0 0.0
    %182 = vmatpush1.msra.mxu0 0.0
    %183 = vmatprep.subr.mxu0 0.0
    %184 = vmatpush1.msra.mxu0 0.0
    %185 = vmatprep.subr.mxu0 0.0
    %186 = vmatpush1.msra.mxu0 0.0
    %187 = vmatprep.subr.mxu0 0.0
    %188 = vmatpush1.msra.mxu0 0.0
    %189 = vmatprep.subr.mxu0 0.0
    %190 = vmatpush1.msra.mxu0 0.0
    %191 = vmatprep.subr.mxu0 0.0
    %192 = vmatpush1.msra.mxu0 0.0
    %193 = vmatprep.subr.mxu0 0.0
    %194 = vmatpush1.msra.mxu0 0.0
    %195 = vmatprep.subr.mxu0 0.0
    %196 = vmatpush1.msra.mxu0 0.0
    %197 = vmatprep.subr.mxu0 0.0
    %198 = vmatpush1.msra.mxu0 0.0
    %199 = vmatprep.subr.mxu0 0.0
    %200 = vmatpush1.msra.mxu0 0.0
    %201 = vmatprep.subr.mxu0 0.0
    %202 = vmatpush1.msra.mxu0 0.0
    %203 = vmatprep.subr.mxu0 0.0
    %204 = vmatpush1.msra.mxu0 0.0
    %205 = vmatprep.subr.mxu0 0.0
    %206 = vmatpush1.msra.mxu0 0.0
    %207 = vmatprep.subr.mxu0 0.0
    %208 = vmatpush1.msra.mxu0 0.0
    %209 = vmatprep.subr.mxu0 0.0
    %210 = vmatpush1.msra.mxu0 0.0
    %211 = vmatprep.subr.mxu0 0.0
    %212 = vmatpush1.msra.mxu0 0.0
    %213 = vmatprep.subr.mxu0 0.0
    %214 = vmatpush1.msra.mxu0 0.0
    %215 = vmatprep.subr.mxu0 0.0
    %216 = vmatpush1.msra.mxu0 0.0
    %217 = vmatprep.subr.mxu0 0.0
    %218 = vmatpush1.msra.mxu0 0.0
    %219 = vmatprep.subr.mxu0 0.0
    %220 = vmatpush1.msra.mxu0 0.0
    %221 = vmatprep.subr.mxu0 0.0
    %222 = vmatpush1.msra.mxu0 0.0
    %223 = vmatprep.subr.mxu0 0.0
    %224 = vmatpush1.msra.mxu0 0.0
    %225 = vmatprep.subr.mxu0 0.0
    %226 = vmatpush1.msra.mxu0 0.0
    %227 = vmatprep.subr.mxu0 0.0
    %228 = vmatpush1.msra.mxu0 0.0
    %229 = vmatprep.subr.mxu0 0.0
    %230 = vmatpush1.msra.mxu0 0.0
    %231 = vmatprep.subr.mxu0 0.0
    %232 = vmatpush1.msra.mxu0 0.0
    %233 = vmatprep.subr.mxu0 0.0
    %234 = vmatpush1.msra.mxu0 0.0
    %235 = vmatprep.subr.mxu0 0.0
    %236 = vmatpush1.msra.mxu0 0.0
    %237 = vmatprep.subr.mxu0 0.0
    %238 = vmatpush1.msra.mxu0 0.0
    %239 = vmatprep.subr.mxu0 0.0
    %240 = vmatpush1.msra.mxu0 0.0
    %241 = vmatprep.mubr.f32.mxu0 0.0
    %242 = vmatmul.mubr.f32.gmra.mrb[0].mxu0 %v172
    %v243 = vpop.f32.mrb[0].mxu0
    %v244 = vadd.f32 %v160, %v243
    %v245 = vpop.f32.mrb[0].mxu0
    %246 = vdwg.mxu0
    %v247 = vmax.f32 %v244, 0.0
    %248 = vst [vmem:[#allocation2] sm:$0xff] %v247
    %251 = vrot.lane.b32.xlu0 %v153, 1
    %v252 = vpop.permute.xlu0 %251
    %253 = vrot.lane.b32.xlu0 %v154, 1
    %v254 = vpop.permute.xlu0 %253
    %v255 = vsel %vm168, %v252, %v254
    %v256 = vsel %vm174, %v255, 0
    %258 = vmatprep.subr.mxu0 0.0
    %259 = vmatpush1.msra.mxu0 %v256
    %260 = vmatprep.subr.mxu0 0.0
    %261 = vmatpush1.msra.mxu0 0.0
    %262 = vmatprep.subr.mxu0 0.0
    %263 = vmatpush1.msra.mxu0 0.0
    %264 = vmatprep.subr.mxu0 0.0
    %265 = vmatpush1.msra.mxu0 0.0
    %266 = vmatprep.subr.mxu0 0.0
    %267 = vmatpush1.msra.mxu0 0.0
    %268 = vmatprep.subr.mxu0 0.0
    %269 = vmatpush1.msra.mxu0 0.0
    %270 = vmatprep.subr.mxu0 0.0
    %271 = vmatpush1.msra.mxu0 0.0
    %272 = vmatprep.subr.mxu0 0.0
    %273 = vmatpush1.msra.mxu0 0.0
    %274 = vmatprep.subr.mxu0 0.0
    %275 = vmatpush1.msra.mxu0 0.0
    %276 = vmatprep.subr.mxu0 0.0
    %277 = vmatpush1.msra.mxu0 0.0
    %278 = vmatprep.subr.mxu0 0.0
    %279 = vmatpush1.msra.mxu0 0.0
    %280 = vmatprep.subr.mxu0 0.0
    %281 = vmatpush1.msra.mxu0 0.0
    %282 = vmatprep.subr.mxu0 0.0
    %283 = vmatpush1.msra.mxu0 0.0
    %284 = vmatprep.subr.mxu0 0.0
    %285 = vmatpush1.msra.mxu0 0.0
    %286 = vmatprep.subr.mxu0 0.0
    %287 = vmatpush1.msra.mxu0 0.0
    %288 = vmatprep.subr.mxu0 0.0
    %289 = vmatpush1.msra.mxu0 0.0
    %290 = vmatprep.subr.mxu0 0.0
    %291 = vmatpush1.msra.mxu0 0.0
    %292 = vmatprep.subr.mxu0 0.0
    %293 = vmatpush1.msra.mxu0 0.0
    %294 = vmatprep.subr.mxu0 0.0
    %295 = vmatpush1.msra.mxu0 0.0
    %296 = vmatprep.subr.mxu0 0.0
    %297 = vmatpush1.msra.mxu0 0.0
    %298 = vmatprep.subr.mxu0 0.0
    %299 = vmatpush1.msra.mxu0 0.0
    %300 = vmatprep.subr.mxu0 0.0
    %301 = vmatpush1.msra.mxu0 0.0
    %302 = vmatprep.subr.mxu0 0.0
    %303 = vmatpush1.msra.mxu0 0.0
    %304 = vmatprep.subr.mxu0 0.0
    %305 = vmatpush1.msra.mxu0 0.0
    %306 = vmatprep.subr.mxu0 0.0
    %307 = vmatpush1.msra.mxu0 0.0
    %308 = vmatprep.subr.mxu0 0.0
    %309 = vmatpush1.msra.mxu0 0.0
    %310 = vmatprep.subr.mxu0 0.0
    %311 = vmatpush1.msra.mxu0 0.0
    %312 = vmatprep.subr.mxu0 0.0
    %313 = vmatpush1.msra.mxu0 0.0
    %314 = vmatprep.subr.mxu0 0.0
    %315 = vmatpush1.msra.mxu0 0.0
    %316 = vmatprep.subr.mxu0 0.0
    %317 = vmatpush1.msra.mxu0 0.0
    %318 = vmatprep.subr.mxu0 0.0
    %319 = vmatpush1.msra.mxu0 0.0
    %320 = vmatprep.subr.mxu0 0.0
    %321 = vmatpush1.msra.mxu0 0.0
    %322 = vmatprep.mubr.f32.mxu0 0.0
    %323 = vmatmul.mubr.f32.gmra.mrb[0].mxu0 %v172
    %v324 = vpop.f32.mrb[0].mxu0
    %v325 = vadd.f32 %v160, %v324
    %v326 = vpop.f32.mrb[0].mxu0
    %327 = vdwg.mxu0
    %v328 = vmax.f32 %v325, 0.0
    %s329 = scalar_lea.vmem [#allocation2], 8
    %330 = vst [vmem:[%s329] sm:$0xff] %v328
    // Predicated region
    $region26: #{tpu_custom_call.1} parent=1 // pred_check
      _
    $region27: #{tpu_custom_call.1} parent=1 // pred_check_branch
      %332 = sbr.rel (0) target = $region29
    $region28: #{tpu_custom_call.1} parent=1 // pred_region
      %s334 = ssub.s32 256, 256
      %335 = vsyncadd [#allocation3], %s334
      %s336 = sshll.u32 [#allocation2], 4
      %s337 = int_to_ptr.vmem [resolvable:$true] %s336
      %342 = dma.vmem_to_hbm [thread:$0]  %s337, 256, %s6, [#allocation3], 128, 128, 8
    $region29: #{tpu_custom_call.1} parent=1 // pred_fallthru
      _
    // Predicated region
    $region30: #{tpu_custom_call.1} parent=1 // pred_check
      _
    $region31: #{tpu_custom_call.1} parent=1 // pred_check_branch
      %344 = sbr.rel (0) target = $region33
    $region32: #{tpu_custom_call.1} parent=1 // pred_region
      %345 = dma.done [#allocation3], 256
    $region33: #{tpu_custom_call.1} parent=1 // pred_fallthru
      _
    %346 = vsyncpa [#allocation3], 1

</llo_original>
